<compile_context>
chip_gen: v7x
topology: tpu7x:2x2x1
jax: 0.10.0
libtpu: 0.0.40
codegen_flags: <defaults>
</compile_context>

<pallas_src>
import jax
import jax.numpy as jnp
from jax import lax
from jax.experimental import pallas as pl
from jax.experimental.pallas import tpu as pltpu


def mlp_kernel(x_ref, w1_ref, b1_ref, w2_ref, b2_ref, o_ref):
    # Layer 1 on the MXU: (TB, D) @ (D, Hp), bias + ReLU on the VPU.
    h = jnp.dot(x_ref[...], w1_ref[...], preferred_element_type=jnp.float32)
    h = jnp.maximum(h + b1_ref[...], 0.0)
    # Layer 2 also on the MXU: contract Hp with w2 kept as a (1, Hp) row so the
    # result is a lane-dense (1, TB) block instead of a (TB, 1) masked store.
    o = lax.dot_general(w2_ref[...], h, (((1,), (1,)), ((), ())),
                        preferred_element_type=jnp.float32)
    o_ref[...] = o + b2_ref[...]


def _round_up(x, m):
    return ((x + m - 1) // m) * m


def _vmem_bytes_estimate(tb, D, Hp):
    # Double-buffered footprint of the pipelined blocks, accounting for (8,128)
    # tile padding (D=16 -> 128 lanes; 1-row blocks -> 8 sublanes).
    x_buf = 2 * _round_up(tb, 8) * _round_up(D, 128) * 4
    out_buf = 2 * 8 * _round_up(tb, 128) * 4
    w_buf = 2 * (_round_up(D, 8) * Hp + 2 * 8 * Hp + 8 * 128) * 4
    return x_buf + out_buf + w_buf


def covid2019_forward(x, w1, b1, w2, b2, *, tb=16384):
    """x: (B, D) f32 -> (B,) f32  (matches Covid2019Model.forward)."""
    B, D = x.shape
    H = w1.shape[1]

    # Pad hidden dim to full lane width (128). Zero columns stay zero through
    # ReLU and hit zero w2 entries -> mathematically identical.
    Hp = _round_up(H, 128)
    w1p = jnp.pad(w1, ((0, 0), (0, Hp - H)))
    b1p = jnp.pad(b1.reshape(1, H), ((0, 0), (0, Hp - H)))
    w2p = jnp.pad(w2.reshape(1, H), ((0, 0), (0, Hp - H)))   # (1, Hp) row layout
    b2p = b2.reshape(1, 1)

    # Batch tiling: clamp the tile to the (8-aligned) batch; when tiling is
    # actually needed keep tb a multiple of 128 so the (1, tb) output block
    # stays lane-aligned.  No padding copy of x: ragged last tile is handled
    # by Pallas' clamped DMA and the [:B] slice below.
    tb = max(8, min(tb, _round_up(B, 8)))
    if tb < B:
        tb = _round_up(tb, 128)
    num_tiles = pl.cdiv(B, tb)

    vmem_limit = min(max(32 * 1024 * 1024,
                         _vmem_bytes_estimate(tb, D, Hp) + (4 << 20)),
                     64 * 1024 * 1024)

    out = pl.pallas_call(
        mlp_kernel,
        out_shape=jax.ShapeDtypeStruct((1, num_tiles * tb), jnp.float32),
        grid_spec=pltpu.PrefetchScalarGridSpec(
            num_scalar_prefetch=0,
            grid=(num_tiles,),
            in_specs=[
                pl.BlockSpec((tb, D), lambda i: (i, 0)),   # x tile
                pl.BlockSpec((D, Hp), lambda i: (0, 0)),   # w1 (resident)
                pl.BlockSpec((1, Hp), lambda i: (0, 0)),   # b1
                pl.BlockSpec((1, Hp), lambda i: (0, 0)),   # w2 as a row
                pl.BlockSpec((1, 1), lambda i: (0, 0)),    # b2
            ],
            out_specs=pl.BlockSpec((1, tb), lambda i: (0, i)),  # lane-dense out
        ),
        compiler_params=pltpu.CompilerParams(
            dimension_semantics=("parallel",),
            vmem_limit_bytes=int(vmem_limit),
        ),
    )(x, w1p, b1p, w2p, b2p)
    return out[0, :B]  # squeeze(1) + drop ragged-tile garbage columns


def init_params(key, input_dim, hidden=64):
    """Deterministic params, PyTorch-style uniform(-1/sqrt(fan_in), 1/sqrt(fan_in))."""
    k1, k2, k3, k4 = jax.random.split(key, 4)
    bound1 = 1.0 / jnp.sqrt(jnp.float32(input_dim))
    bound2 = 1.0 / jnp.sqrt(jnp.float32(hidden))
    w1 = jax.random.uniform(k1, (input_dim, hidden), jnp.float32, -bound1, bound1)
    b1 = jax.random.uniform(k2, (1, hidden), jnp.float32, -bound1, bound1)
    w2 = jax.random.uniform(k3, (hidden, 1), jnp.float32, -bound2, bound2)
    b2 = jax.random.uniform(k4, (1, 1), jnp.float32, -bound2, bound2)
    return w1, b1, w2, b2


def _reference(x, w1, b1, w2, b2):
    h = jnp.maximum(x @ w1 + b1, 0.0)
    return (h @ w2 + b2)[:, 0]


if __name__ == "__main__":
    key = jax.random.PRNGKey(0)
    kx, kx2, kp = jax.random.split(key, 3)

    INPUT_DIM = 16
    w1, b1, w2, b2 = init_params(kp, INPUT_DIM)

    # Small shape consistent with the module (single grid step).
    B = 8
    x = jax.random.normal(kx, (B, INPUT_DIM), dtype=jnp.float32)
    y = jax.block_until_ready(covid2019_forward(x, w1, b1, w2, b2))
    y_ref = _reference(x, w1, b1, w2, b2)
    assert y.shape == (B,)
    assert jnp.allclose(y, y_ref, atol=1e-4, rtol=1e-4)

    # Non-divisible batch with an explicit small tile to exercise the
    # multi-step grid + ragged-last-tile path (no wrapper pad of x).
    B2 = 1000
    x2 = jax.random.normal(kx2, (B2, INPUT_DIM), dtype=jnp.float32)
    y2 = jax.block_until_ready(covid2019_forward(x2, w1, b1, w2, b2, tb=256))
    y2_ref = _reference(x2, w1, b1, w2, b2)
    assert y2.shape == (B2,)
    assert jnp.allclose(y2, y2_ref, atol=1e-4, rtol=1e-4)

    print("KERNEL_OK")
</pallas_src>

<mosaic_0001>
module attributes {stable_mosaic.version = 11 : i64} {
  func.func @mlp_kernel(%arg0: i32, %arg1: memref<8x16xf32, #tpu.memory_space<vmem>>, %arg2: memref<16x128xf32, #tpu.memory_space<vmem>>, %arg3: memref<1x128xf32, #tpu.memory_space<vmem>>, %arg4: memref<1x128xf32, #tpu.memory_space<vmem>>, %arg5: memref<1x1xf32, #tpu.memory_space<vmem>>, %arg6: memref<1x8xf32, #tpu.memory_space<vmem>>) attributes {dimension_semantics = [#tpu.dimension_semantics<parallel>], iteration_bounds = array<i64: 1>, scalar_prefetch = 0 : i64, scratch_operands = 0 : i64, tpu.core_type = #tpu.core_type<tc>, window_params = [{transform_indices = @transform_0, window_bounds = array<i64: 8, 16>}, {pipeline_mode = #tpu.pipeline_mode<synchronous>, transform_indices = @transform_1, window_bounds = array<i64: 16, 128>}, {pipeline_mode = #tpu.pipeline_mode<synchronous>, transform_indices = @transform_2, window_bounds = array<i64: 1, 128>}, {pipeline_mode = #tpu.pipeline_mode<synchronous>, transform_indices = @transform_3, window_bounds = array<i64: 1, 128>}, {pipeline_mode = #tpu.pipeline_mode<synchronous>, transform_indices = @transform_4, window_bounds = array<i64: 1, 1>}, {transform_indices = @transform_5, window_bounds = array<i64: 1, 8>}]} {
    %c0 = arith.constant 0 : index
    %c0_0 = arith.constant 0 : index
    %0 = vector.load %arg1[%c0, %c0_0] : memref<8x16xf32, #tpu.memory_space<vmem>>, vector<8x16xf32>
    %c0_1 = arith.constant 0 : index
    %c0_2 = arith.constant 0 : index
    %1 = vector.load %arg2[%c0_1, %c0_2] : memref<16x128xf32, #tpu.memory_space<vmem>>, vector<16x128xf32>
    %cst = arith.constant dense<0.000000e+00> : vector<8x128xf32>
    %2 = tpu.matmul %0, %1, %cst {dimension_numbers = #tpu.dot_dimension_numbers<[1], [0], [0], [1], [0, 0, 1, 1], [], []>} : vector<8x16xf32>, vector<16x128xf32>, vector<8x128xf32> -> vector<8x128xf32>
    %c0_3 = arith.constant 0 : index
    %c0_4 = arith.constant 0 : index
    %3 = vector.load %arg3[%c0_3, %c0_4] : memref<1x128xf32, #tpu.memory_space<vmem>>, vector<1x128xf32>
    %4 = vector.broadcast %3 : vector<1x128xf32> to vector<8x128xf32>
    %5 = arith.addf %2, %4 : vector<8x128xf32>
    %cst_5 = arith.constant 0.000000e+00 : f32
    %6 = vector.broadcast %cst_5 : f32 to vector<8x128xf32>
    %7 = arith.maximumf %5, %6 : vector<8x128xf32>
    %c0_6 = arith.constant 0 : index
    %c0_7 = arith.constant 0 : index
    %8 = vector.load %arg4[%c0_6, %c0_7] : memref<1x128xf32, #tpu.memory_space<vmem>>, vector<1x128xf32>
    %cst_8 = arith.constant dense<0.000000e+00> : vector<1x8xf32>
    %9 = tpu.matmul %8, %7, %cst_8 {dimension_numbers = #tpu.dot_dimension_numbers<[1], [1], [0], [0], [0, 0, 1, 0], [], []>} : vector<1x128xf32>, vector<8x128xf32>, vector<1x8xf32> -> vector<1x8xf32>
    %c0_9 = arith.constant 0 : index
    %c0_10 = arith.constant 0 : index
    %10 = vector.load %arg5[%c0_9, %c0_10] : memref<1x1xf32, #tpu.memory_space<vmem>>, vector<1x1xf32>
    %11 = vector.broadcast %10 : vector<1x1xf32> to vector<1x8xf32>
    %12 = arith.addf %9, %11 : vector<1x8xf32>
    %c0_11 = arith.constant 0 : index
    %c0_12 = arith.constant 0 : index
    %13 = vector.load %arg6[%c0_11, %c0_12] : memref<1x8xf32, #tpu.memory_space<vmem>>, vector<1x8xf32>
    tpu.vector_store %arg6[%c0_11, %c0_12], %12 {strides = array<i32>} : memref<1x8xf32, #tpu.memory_space<vmem>>, vector<1x8xf32>,
    return
  }
  func.func @transform_0(%arg0: i32) -> (i32, i32) {
    %c0_i32 = arith.constant 0 : i32
    %c0_i32_0 = arith.constant 0 : i32
    return %arg0, %c0_i32 : i32, i32
  }
  func.func @transform_1(%arg0: i32) -> (i32, i32) {
    %c0_i32 = arith.constant 0 : i32
    %c0_i32_0 = arith.constant 0 : i32
    %c0_i32_1 = arith.constant 0 : i32
    return %c0_i32, %c0_i32_0 : i32, i32
  }
  func.func @transform_2(%arg0: i32) -> (i32, i32) {
    %c0_i32 = arith.constant 0 : i32
    %c0_i32_0 = arith.constant 0 : i32
    %c0_i32_1 = arith.constant 0 : i32
    return %c0_i32, %c0_i32_0 : i32, i32
  }
  func.func @transform_3(%arg0: i32) -> (i32, i32) {
    %c0_i32 = arith.constant 0 : i32
    %c0_i32_0 = arith.constant 0 : i32
    %c0_i32_1 = arith.constant 0 : i32
    return %c0_i32, %c0_i32_0 : i32, i32
  }
  func.func @transform_4(%arg0: i32) -> (i32, i32) {
    %c0_i32 = arith.constant 0 : i32
    %c0_i32_0 = arith.constant 0 : i32
    %c0_i32_1 = arith.constant 0 : i32
    return %c0_i32, %c0_i32_0 : i32, i32
  }
  func.func @transform_5(%arg0: i32) -> (i32, i32) {
    %c0_i32 = arith.constant 0 : i32
    %c0_i32_0 = arith.constant 0 : i32
    return %c0_i32, %arg0 : i32, i32
  }
}

</mosaic_0001>

<llo_original>
// kernel: tpu_custom_call.1
$region0: #{tpu_custom_call.1}
  #allocation0 [shape = 'u32[]', space=smem, size = 0x4, offset = 0x4, fixed_abs, tag = 'smem constant byte address 0x4 - core index']
  #allocation1 [shape = 'u32[144,128]{1,0:T(1,128)}', space=vmem, size = 0x12000, scoped, tag = 'internal scratch']
  #allocation2 [shape = 'f32[1,1]{1,0:T(1,128)S(1)}', space=vmem, size = 0x200, scoped, tag = 'scoped memory for tpu_custom_call.1']
  %s0 = inlined_call_operand.hbm [shape: f32[8,16], index: 0, kind: input, shape index: {}]
  %s1 = inlined_call_operand.hbm [shape: f32[16,128], index: 1, kind: input, shape index: {}]
  %s2 = inlined_call_operand.vmem [shape: f32[1,128], index: 2, kind: input, shape index: {}]
  %s3 = inlined_call_operand.vmem [shape: f32[1,128], index: 3, kind: input, shape index: {}]
  %s4 = inlined_call_operand.<no memory space> [shape: f32[1,1], index: 4, kind: input, shape index: {}]
  %s5 = inlined_call_operand.hbm [shape: f32[1,8], index: 5, kind: output, shape index: {}]
  %s6 = sld [smem:[#allocation0]]
  $region38: #{tpu_custom_call.1} parent=0
    _
  %s8 = ssub.s32 1, %s6
  %s9 = scalar_select 0, %s8, %s6
  %v10 = vstv %s4
  %11 = vst [vmem:[#allocation2] sm:$0x1] %v10
  $region1: #{tpu_custom_call.1} parent=0
    #allocation3 [shape = 'u8[4096]{0}', space=vmem, size = 0x1000, scoped, tag = 'input window, operand 0, single buffered']
    #allocation4 [shape = 's32[1]{0}', space=sflag, size = 0x4, scoped, tag = 'scoped memory for tpu_custom_call.1']
    #allocation5 [shape = 's32[1]{0}', space=sflag, size = 0x4, scoped, tag = 'scoped memory for tpu_custom_call.1']
    #allocation6 [shape = 'u8[8192]{0}', space=vmem, size = 0x2000, scoped, tag = 'input window, operand 1, single buffered']
    #allocation7 [shape = 's32[1]{0}', space=sflag, size = 0x4, scoped, tag = 'scoped memory for tpu_custom_call.1']
    #allocation8 [shape = 'u8[512]{0}', space=vmem, size = 0x400, scoped, tag = 'output window, operand 0, single buffered']
    %12 = vsyncpa [#allocation4], 0
    %13 = vsyncpa [#allocation7], 0
    %14 = vsyncpa [#allocation5], 0
    // Predicated region
    $region2: #{tpu_custom_call.1} parent=1 // pred_check
      _
    $region3: #{tpu_custom_call.1} parent=1 // pred_check_branch
      %16 = sbr.rel (0) target = $region5
    $region4: #{tpu_custom_call.1} parent=1 // pred_region
      %s18 = ssub.s32 128, 128
      %19 = vsyncadd [#allocation4], %s18
      %s21 = sshll.u32 [#allocation3], 4
      %s22 = int_to_ptr.vmem [resolvable:$true] %s21
      %24 = dma.hbm_to_vmem [thread:$0]  %s0, 128, %s22, [#allocation4]
    $region5: #{tpu_custom_call.1} parent=1 // pred_fallthru
      _
    // Predicated region
    $region6: #{tpu_custom_call.1} parent=1 // pred_check
      _
    $region7: #{tpu_custom_call.1} parent=1 // pred_check_branch
      %26 = sbr.rel (0) target = $region9
    $region8: #{tpu_custom_call.1} parent=1 // pred_region
      %s28 = ssub.s32 256, 256
      %29 = vsyncadd [#allocation7], %s28
      %s30 = sshll.u32 [#allocation6], 4
      %s31 = int_to_ptr.vmem [resolvable:$true] %s30
      %36 = dma.hbm_to_vmem [thread:$0]  %s1, 256, %s31, [#allocation7], 128, 128, 8
    $region9: #{tpu_custom_call.1} parent=1 // pred_fallthru
      _
    // Predicated region
    $region10: #{tpu_custom_call.1} parent=1 // pred_check
      _
    $region11: #{tpu_custom_call.1} parent=1 // pred_check_branch
      %38 = sbr.rel (0) target = $region13
    $region12: #{tpu_custom_call.1} parent=1 // pred_region
      _
    $region13: #{tpu_custom_call.1} parent=1 // pred_fallthru
      _
    // Predicated region
    $region14: #{tpu_custom_call.1} parent=1 // pred_check
      _
    $region15: #{tpu_custom_call.1} parent=1 // pred_check_branch
      %40 = sbr.rel (0) target = $region17
    $region16: #{tpu_custom_call.1} parent=1 // pred_region
      _
    $region17: #{tpu_custom_call.1} parent=1 // pred_fallthru
      _
    // Predicated region
    $region18: #{tpu_custom_call.1} parent=1 // pred_check
      _
    $region19: #{tpu_custom_call.1} parent=1 // pred_check_branch
      %42 = sbr.rel (0) target = $region21
    $region20: #{tpu_custom_call.1} parent=1 // pred_region
      _
    $region21: #{tpu_custom_call.1} parent=1 // pred_fallthru
      _
    // Predicated region
    $region22: #{tpu_custom_call.1} parent=1 // pred_check
      _
    $region23: #{tpu_custom_call.1} parent=1 // pred_check_branch
      %44 = sbr.rel (0) target = $region25
    $region24: #{tpu_custom_call.1} parent=1 // pred_region
      %45 = dma.done [#allocation4], 128
    $region25: #{tpu_custom_call.1} parent=1 // pred_fallthru
      _
    // Predicated region
    $region26: #{tpu_custom_call.1} parent=1 // pred_check
      _
    $region27: #{tpu_custom_call.1} parent=1 // pred_check_branch
      %47 = sbr.rel (0) target = $region29
    $region28: #{tpu_custom_call.1} parent=1 // pred_region
      %48 = dma.done [#allocation7], 256
    $region29: #{tpu_custom_call.1} parent=1 // pred_fallthru
      _
    %v49 = vld [vmem:[#allocation3] sm:$0xff]
    %v50 = vld [vmem:[#allocation6] sm:$0xff]
    %v51 = vld [vmem:[#allocation6 + $0x8] sm:$0xff]
    %v52 = vld [vmem:[%s2] sm:$0x1]
    %v54 = vlaneseq
    %v55 = vshrl.u32 %v54, 7
    %v56 = vsub.s32 0, %v55
    %v57 = vrot.slane %v52, %v56
    %vm59 = vcmask 130048
    %v61 = vsel %vm59, %v49, 0
    %63 = vmatprep.subr.mxu0 0.0
    %64 = vmatpush1.msra.mxu0 %v50
    %65 = vmatprep.subr.mxu0 0.0
    %66 = vmatpush1.msra.mxu0 %v51
    %67 = vmatprep.subr.mxu0 0.0
    %68 = vmatpush1.msra.mxu0 0.0
    %69 = vmatprep.subr.mxu0 0.0
    %70 = vmatpush1.msra.mxu0 0.0
    %71 = vmatprep.subr.mxu0 0.0
    %72 = vmatpush1.msra.mxu0 0.0
    %73 = vmatprep.subr.mxu0 0.0
    %74 = vmatpush1.msra.mxu0 0.0
    %75 = vmatprep.subr.mxu0 0.0
    %76 = vmatpush1.msra.mxu0 0.0
    %77 = vmatprep.subr.mxu0 0.0
    %78 = vmatpush1.msra.mxu0 0.0
    %79 = vmatprep.subr.mxu0 0.0
    %80 = vmatpush1.msra.mxu0 0.0
    %81 = vmatprep.subr.mxu0 0.0
    %82 = vmatpush1.msra.mxu0 0.0
    %83 = vmatprep.subr.mxu0 0.0
    %84 = vmatpush1.msra.mxu0 0.0
    %85 = vmatprep.subr.mxu0 0.0
    %86 = vmatpush1.msra.mxu0 0.0
    %87 = vmatprep.subr.mxu0 0.0
    %88 = vmatpush1.msra.mxu0 0.0
    %89 = vmatprep.subr.mxu0 0.0
    %90 = vmatpush1.msra.mxu0 0.0
    %91 = vmatprep.subr.mxu0 0.0
    %92 = vmatpush1.msra.mxu0 0.0
    %93 = vmatprep.subr.mxu0 0.0
    %94 = vmatpush1.msra.mxu0 0.0
    %95 = vmatprep.subr.mxu0 0.0
    %96 = vmatpush1.msra.mxu0 0.0
    %97 = vmatprep.subr.mxu0 0.0
    %98 = vmatpush1.msra.mxu0 0.0
    %99 = vmatprep.subr.mxu0 0.0
    %100 = vmatpush1.msra.mxu0 0.0
    %101 = vmatprep.subr.mxu0 0.0
    %102 = vmatpush1.msra.mxu0 0.0
    %103 = vmatprep.subr.mxu0 0.0
    %104 = vmatpush1.msra.mxu0 0.0
    %105 = vmatprep.subr.mxu0 0.0
    %106 = vmatpush1.msra.mxu0 0.0
    %107 = vmatprep.subr.mxu0 0.0
    %108 = vmatpush1.msra.mxu0 0.0
    %109 = vmatprep.subr.mxu0 0.0
    %110 = vmatpush1.msra.mxu0 0.0
    %111 = vmatprep.subr.mxu0 0.0
    %112 = vmatpush1.msra.mxu0 0.0
    %113 = vmatprep.subr.mxu0 0.0
    %114 = vmatpush1.msra.mxu0 0.0
    %115 = vmatprep.subr.mxu0 0.0
    %116 = vmatpush1.msra.mxu0 0.0
    %117 = vmatprep.subr.mxu0 0.0
    %118 = vmatpush1.msra.mxu0 0.0
    %119 = vmatprep.subr.mxu0 0.0
    %120 = vmatpush1.msra.mxu0 0.0
    %121 = vmatprep.subr.mxu0 0.0
    %122 = vmatpush1.msra.mxu0 0.0
    %123 = vmatprep.subr.mxu0 0.0
    %124 = vmatpush1.msra.mxu0 0.0
    %125 = vmatprep.subr.mxu0 0.0
    %126 = vmatpush1.msra.mxu0 0.0
    %127 = vmatprep.mubr.f32.mxu0 0.0
    %128 = vmatmul.mubr.f32.gmra.mrb[0].mxu0 %v61
    %v129 = vpop.f32.mrb[0].mxu0
    %v130 = vadd.f32 %v57, %v129
    %v131 = vpop.f32.mrb[0].mxu0
    %132 = vdwg.mxu0
    %v133 = vmax.f32 %v130, 0.0
    %v134 = vld [vmem:[%s3] sm:$0x1]
    %v135 = vld [vmem:[#allocation2] sm:$0x1]
    %137 = vset.pattern.permute.xlu0 0
    %138 = vperm.xlu0 %137, %v135
    %v139 = vpop.permute.xlu0 %138
    %v141 = vlaneseq
    %v142 = vshrl.u32 %v141, 7
    %v143 = vsub.s32 0, %v142
    %v144 = vrot.slane %v139, %v143
    %145 = vmatprep.subr.mxu0 0.0
    %146 = vmatpush1.xpose.msra.mxu0 %v133
    %147 = vmatprep.subr.mxu0 0.0
    %148 = vmatpush1.xpose.msra.mxu0 0.0
    %149 = vmatprep.subr.mxu0 0.0
    %150 = vmatpush1.xpose.msra.mxu0 0.0
    %151 = vmatprep.subr.mxu0 0.0
    %152 = vmatpush1.xpose.msra.mxu0 0.0
    %153 = vmatprep.subr.mxu0 0.0
    %154 = vmatpush1.xpose.msra.mxu0 0.0
    %155 = vmatprep.subr.mxu0 0.0
    %156 = vmatpush1.xpose.msra.mxu0 0.0
    %157 = vmatprep.subr.mxu0 0.0
    %158 = vmatpush1.xpose.msra.mxu0 0.0
    %159 = vmatprep.subr.mxu0 0.0
    %160 = vmatpush1.xpose.msra.mxu0 0.0
    %161 = vmatprep.subr.mxu0 0.0
    %162 = vmatpush1.xpose.msra.mxu0 0.0
    %163 = vmatprep.subr.mxu0 0.0
    %164 = vmatpush1.xpose.msra.mxu0 0.0
    %165 = vmatprep.subr.mxu0 0.0
    %166 = vmatpush1.xpose.msra.mxu0 0.0
    %167 = vmatprep.subr.mxu0 0.0
    %168 = vmatpush1.xpose.msra.mxu0 0.0
    %169 = vmatprep.subr.mxu0 0.0
    %170 = vmatpush1.xpose.msra.mxu0 0.0
    %171 = vmatprep.subr.mxu0 0.0
    %172 = vmatpush1.xpose.msra.mxu0 0.0
    %173 = vmatprep.subr.mxu0 0.0
    %174 = vmatpush1.xpose.msra.mxu0 0.0
    %175 = vmatprep.subr.mxu0 0.0
    %176 = vmatpush1.xpose.msra.mxu0 0.0
    %177 = vmatprep.subr.mxu0 0.0
    %178 = vmatpush1.xpose.msra.mxu0 0.0
    %179 = vmatprep.subr.mxu0 0.0
    %180 = vmatpush1.xpose.msra.mxu0 0.0
    %181 = vmatprep.subr.mxu0 0.0
    %182 = vmatpush1.xpose.msra.mxu0 0.0
    %183 = vmatprep.subr.mxu0 0.0
    %184 = vmatpush1.xpose.msra.mxu0 0.0
    %185 = vmatprep.subr.mxu0 0.0
    %186 = vmatpush1.xpose.msra.mxu0 0.0
    %187 = vmatprep.subr.mxu0 0.0
    %188 = vmatpush1.xpose.msra.mxu0 0.0
    %189 = vmatprep.subr.mxu0 0.0
    %190 = vmatpush1.xpose.msra.mxu0 0.0
    %191 = vmatprep.subr.mxu0 0.0
    %192 = vmatpush1.xpose.msra.mxu0 0.0
    %193 = vmatprep.subr.mxu0 0.0
    %194 = vmatpush1.xpose.msra.mxu0 0.0
    %195 = vmatprep.subr.mxu0 0.0
    %196 = vmatpush1.xpose.msra.mxu0 0.0
    %197 = vmatprep.subr.mxu0 0.0
    %198 = vmatpush1.xpose.msra.mxu0 0.0
    %199 = vmatprep.subr.mxu0 0.0
    %200 = vmatpush1.xpose.msra.mxu0 0.0
    %201 = vmatprep.subr.mxu0 0.0
    %202 = vmatpush1.xpose.msra.mxu0 0.0
    %203 = vmatprep.subr.mxu0 0.0
    %204 = vmatpush1.xpose.msra.mxu0 0.0
    %205 = vmatprep.subr.mxu0 0.0
    %206 = vmatpush1.xpose.msra.mxu0 0.0
    %207 = vmatprep.subr.mxu0 0.0
    %208 = vmatpush1.xpose.msra.mxu0 0.0
    %209 = vmatprep.mubr.f32.mxu0 0.0
    %210 = vmatmul.mubr.f32.gmra.mrb[0].mxu0 %v134
    %v211 = vpop.f32.mrb[0].mxu0
    %v212 = vadd.f32 %v144, %v211
    %v213 = vpop.f32.mrb[0].mxu0
    %214 = vdwg.mxu0
    %vm215 = vcmask 57344
    %216 = vst.msk [vmem:[#allocation8] sm:$0x1] %vm215, %v212
    // Predicated region
    $region30: #{tpu_custom_call.1} parent=1 // pred_check
      _
    $region31: #{tpu_custom_call.1} parent=1 // pred_check_branch
      %218 = sbr.rel (0) target = $region33
    $region32: #{tpu_custom_call.1} parent=1 // pred_region
      %s220 = ssub.s32 16, 16
      %221 = vsyncadd [#allocation5], %s220
      %s223 = sshll.u32 [#allocation8], 4
      %s224 = int_to_ptr.vmem [resolvable:$true] %s223
      %226 = dma.vmem_to_hbm [thread:$0]  %s224, 16, %s5, [#allocation5]
    $region33: #{tpu_custom_call.1} parent=1 // pred_fallthru
      _
    // Predicated region
    $region34: #{tpu_custom_call.1} parent=1 // pred_check
      _
    $region35: #{tpu_custom_call.1} parent=1 // pred_check_branch
      %228 = sbr.rel (0) target = $region37
    $region36: #{tpu_custom_call.1} parent=1 // pred_region
      %229 = dma.done [#allocation5], 16
    $region37: #{tpu_custom_call.1} parent=1 // pred_fallthru
      _
    %230 = vsyncpa [#allocation4], 1
    %231 = vsyncpa [#allocation7], 1
    %232 = vsyncpa [#allocation5], 1

</llo_original>
